<compile_context>
chip_gen: v7x
topology: tpu7x:2x2x1
jax: 0.10.0
libtpu: 0.0.40
codegen_flags: <defaults>
</compile_context>

<pallas_src>
import functools

import numpy as np

import jax
import jax.numpy as jnp
from jax.experimental import pallas as pl
from jax.experimental.pallas import tpu as pltpu


def _round_up(v, m):
    return (v + m - 1) // m * m


def _pick_tile(n, max_tile, align, min_blocks=1):
    """Largest tile (multiple of `align`, <= max_tile) with small ragged-tail
    padding, giving at least `min_blocks` grid blocks when n allows it."""
    n_al = _round_up(max(n, 1), align)
    upper = _round_up(min(max_tile, n_al), align)
    cands, t = [], upper
    while True:
        cands.append(t)
        if t <= align:
            break
        nxt = max(align, _round_up(t // 2, align))
        if nxt == t:
            break
        t = nxt
    want = min_blocks if (n_al // align) >= min_blocks else 1
    thresh = max(align, n // 8)
    best_key, best_t = None, cands[-1]
    for t in cands:  # descending
        nb = -(-n // t)
        if nb < want:
            continue
        pad = nb * t - n
        if pad <= thresh:
            return t
        key = (pad, -t)
        if best_key is None or key < best_key:
            best_key, best_t = key, t
    return best_t


# ---------------------------------------------------------------------------
# Kernel 1: projection  h = x @ W^T   (run once, O(N * dim_in * dim_out))
# ---------------------------------------------------------------------------
def _project_kernel(x_ref, wt_ref, h_ref):
    h_ref[...] = jnp.dot(
        x_ref[...], wt_ref[...], preferred_element_type=jnp.float32
    ).astype(h_ref.dtype)


def _project(x_p, wt_p, *, tile, out_dtype):
    n_red, dim_in = x_p.shape
    dim_out_p = wt_p.shape[1]
    return pl.pallas_call(
        _project_kernel,
        out_shape=jax.ShapeDtypeStruct((n_red, dim_out_p), out_dtype),
        grid_spec=pltpu.PrefetchScalarGridSpec(
            num_scalar_prefetch=0,
            grid=(n_red // tile,),
            in_specs=[
                pl.BlockSpec((tile, dim_in), lambda i: (i, 0)),        # x rows
                pl.BlockSpec((dim_in, dim_out_p), lambda i: (0, 0)),   # W^T resident
            ],
            out_specs=pl.BlockSpec((tile, dim_out_p), lambda i: (i, 0)),
        ),
        compiler_params=pltpu.CompilerParams(
            dimension_semantics=("parallel",),
        ),
    )(x_p, wt_p)


# ---------------------------------------------------------------------------
# Kernel 2: aggregation  out = adj @ h   (HBM-bound; block-sparse k-skip)
# ---------------------------------------------------------------------------
def _aggregate_kernel(ids_ref, counts_ref, adj_ref, h_ref, out_ref, *, mxu_dtype):
    i = pl.program_id(0)
    k = pl.program_id(1)

    @pl.when(k == 0)
    def _():
        out_ref[...] = jnp.zeros_like(out_ref)

    # Skip padded table slots (and fully-empty row tiles).
    @pl.when(k < counts_ref[i])
    def _():
        out_ref[...] += jnp.dot(
            adj_ref[...].astype(mxu_dtype),   # upcast AFTER the narrow DMA
            h_ref[...],                       # already stored at mxu_dtype
            preferred_element_type=jnp.float32,
        )


def vanilla_gnn_layer(
    x,
    weight,
    adj,
    *,
    tm=1024,
    tk=1024,
    adj_dtype=jnp.bfloat16,     # 0/1 adjacency -> exact; use f32 for weighted adj
    mxu_dtype=jnp.float32,      # bf16 feeds the bf16 MXU peak (not bit-exact)
    skip_zero_blocks=True,
):
    """x: [N, dim_in], weight: [dim_out, dim_in] (PyTorch Linear layout),
    adj: [N, N] dense adjacency (dense stand-in for the sparse matrix)."""
    n, dim_in = x.shape
    dim_out = weight.shape[0]
    out_dtype = x.dtype
    f32 = jnp.float32

    dim_out_p = _round_up(dim_out, 128)          # lane-dense output / full MXU width
    # Row tile: multiple of 32 covers f32/bf16/int8 sublane packing; >=2 blocks
    # so the "parallel" row axis can shard across both v7x TensorCores.
    tm = _pick_tile(n, tm, 32, min_blocks=2)
    # Reduction tile (adj cols == h rows): lane axis, multiple of 128.
    tk = _pick_tile(n, tk, 128, min_blocks=1)
    n_rows = _round_up(n, tm)
    n_red = _round_up(n, tk)
    n_i, n_k = n_rows // tm, n_red // tk

    # --- projection (hoisted: computed once, not per (i, k) tile) ------------
    x_p = x.astype(f32)
    if n_red != n:
        x_p = jnp.pad(x_p, ((0, n_red - n), (0, 0)))
    wt = weight.T.astype(f32)
    if dim_out_p != dim_out:
        wt = jnp.pad(wt, ((0, 0), (0, dim_out_p - dim_out)))
    h = _project(x_p, wt, tile=tk, out_dtype=mxu_dtype)      # (n_red, dim_out_p)

    # --- adj: fuse dtype narrowing with padding, skip both when no-ops -------
    adj_c = adj if adj.dtype == adj_dtype else adj.astype(adj_dtype)
    if n_rows != n or n_red != n:
        adj_p = jnp.pad(adj_c, ((0, n_rows - n), (0, n_red - n)))
    else:
        adj_p = adj_c

    # --- per-row-tile table of non-empty adj column blocks -------------------
    if skip_zero_blocks:
        occ = (adj_p.reshape(n_i, tm, n_k, tk) != 0).any(axis=(1, 3))
        occ_np = np.asarray(jax.device_get(occ))
        counts_np = occ_np.sum(axis=1).astype(np.int32)
        nmax = max(int(counts_np.max()), 1)
        ids_np = np.zeros((n_i, nmax), dtype=np.int32)
        for r in range(n_i):
            idx = np.flatnonzero(occ_np[r]).astype(np.int32)
            if idx.size:
                ids_np[r, : idx.size] = idx
                ids_np[r, idx.size:] = idx[-1]   # repeat -> DMA elided, compute gated
    else:
        nmax = n_k
        counts_np = np.full((n_i,), n_k, dtype=np.int32)
        ids_np = np.tile(np.arange(n_k, dtype=np.int32), (n_i, 1))
    ids = jnp.asarray(ids_np)                 # (n_i, nmax) int32, SMEM-prefetched
    counts = jnp.asarray(counts_np)           # (n_i,)      int32

    def adj_map(i, k, ids_ref, counts_ref):
        return (i, ids_ref[i, k])

    def h_map(i, k, ids_ref, counts_ref):
        return (ids_ref[i, k], 0)

    def out_map(i, k, ids_ref, counts_ref):
        return (i, 0)

    # --- VMEM budget: double-buffered adj + h tiles + resident out block -----
    needed = (2 * tm * tk * jnp.dtype(adj_dtype).itemsize
              + 2 * tk * dim_out_p * jnp.dtype(mxu_dtype).itemsize
              + 2 * tm * dim_out_p * 4)
    try:
        phys_vmem = pltpu.get_tpu_info().vmem_capacity_bytes
    except Exception:  # pragma: no cover - conservative fallback (v7x per-TC)
        phys_vmem = 64 << 20
    vmem_limit = int(min(max(2 * needed, 32 << 20), int(phys_vmem * 0.85)))

    kernel = functools.partial(_aggregate_kernel, mxu_dtype=mxu_dtype)

    out_p = pl.pallas_call(
        kernel,
        out_shape=jax.ShapeDtypeStruct((n_rows, dim_out_p), f32),
        grid_spec=pltpu.PrefetchScalarGridSpec(
            num_scalar_prefetch=2,
            grid=(n_i, nmax),
            in_specs=[
                pl.BlockSpec((tm, tk), adj_map),           # adj tile (narrow dtype)
                pl.BlockSpec((tk, dim_out_p), h_map),      # matching h rows
            ],
            out_specs=pl.BlockSpec((tm, dim_out_p), out_map),  # resident across k
        ),
        compiler_params=pltpu.CompilerParams(
            dimension_semantics=("parallel", "arbitrary"),
            vmem_limit_bytes=vmem_limit,
        ),
    )(ids, counts, adj_p, h)

    out = out_p[:n, :dim_out]
    return out if out_dtype == f32 else out.astype(out_dtype)


# ---------------------------------------------------------------------------
# Self-test
# ---------------------------------------------------------------------------
def _reference(x, weight, adj):
    h = jnp.dot(x, weight.T, precision=jax.lax.Precision.HIGHEST)
    return jnp.dot(adj, h, precision=jax.lax.Precision.HIGHEST)


def _make_inputs(key, n, dim_in, dim_out, density=0.1):
    kx, kw, ka = jax.random.split(key, 3)
    x = jax.random.normal(kx, (n, dim_in), dtype=jnp.float32)
    bound = 1.0 / (dim_in ** 0.5)       # nn.Linear default init
    weight = jax.random.uniform(kw, (dim_out, dim_in),
                                minval=-bound, maxval=bound, dtype=jnp.float32)
    adj = (jax.random.uniform(ka, (n, n)) < density).astype(jnp.float32)
    adj = jnp.maximum(adj, jnp.eye(n, dtype=jnp.float32))   # 0/1 adj + self loops
    return x, weight, adj


if __name__ == "__main__":
    key = jax.random.PRNGKey(0)
    k1, k2, k3 = jax.random.split(key, 3)

    # Case 1: 0/1 adjacency, bf16 adj storage + f32 MXU (exact path), multi row tile.
    N, DIN, DOUT = 128, 32, 64
    x, w, adj = _make_inputs(k1, N, DIN, DOUT)
    out = jax.block_until_ready(vanilla_gnn_layer(x, w, adj))
    ref = _reference(x, w, adj)
    assert out.shape == (N, DOUT)
    assert jnp.allclose(out, ref, atol=1e-3, rtol=1e-3)

    # Case 2: ragged N (padding path), dense k sweep, f32 adj storage.
    N2, DIN2, DOUT2 = 200, 48, 96
    x2, w2, adj2 = _make_inputs(k2, N2, DIN2, DOUT2)
    out2 = jax.block_until_ready(
        vanilla_gnn_layer(x2, w2, adj2, adj_dtype=jnp.float32, skip_zero_blocks=False)
    )
    ref2 = _reference(x2, w2, adj2)
    assert out2.shape == (N2, DOUT2)
    assert jnp.allclose(out2, ref2, atol=1e-3, rtol=1e-3)

    # Case 3: block-structured sparse adjacency -> exercises the block-sparse
    # k-skip (different row tiles fetch different column blocks, others skipped).
    N3, DIN3, DOUT3 = 256, 32, 64
    kx3, kw3, ka3 = jax.random.split(k3, 3)
    x3 = jax.random.normal(kx3, (N3, DIN3), dtype=jnp.float32)
    w3 = jax.random.uniform(kw3, (DOUT3, DIN3), minval=-0.2, maxval=0.2,
                            dtype=jnp.float32)
    half = N3 // 2
    blk = (jax.random.uniform(ka3, (half, half)) < 0.15).astype(jnp.float32)
    adj3 = jnp.zeros((N3, N3), jnp.float32)
    adj3 = adj3.at[:half, :half].set(blk).at[half:, half:].set(blk)
    adj3 = jnp.maximum(adj3, jnp.eye(N3, dtype=jnp.float32))
    out3 = jax.block_until_ready(vanilla_gnn_layer(x3, w3, adj3, tm=64, tk=128))
    ref3 = _reference(x3, w3, adj3)
    assert jnp.allclose(out3, ref3, atol=1e-3, rtol=1e-3)

    # Case 4: bf16 MXU path (adj + h both bf16, f32 accumulation) - looser tol.
    out4 = jax.block_until_ready(
        vanilla_gnn_layer(x3, w3, adj3, tm=64, tk=128, mxu_dtype=jnp.bfloat16)
    )
    assert jnp.allclose(out4, ref3, atol=5e-2, rtol=5e-2)

    print("KERNEL_OK")
</pallas_src>

<mosaic_0001>
module attributes {stable_mosaic.version = 11 : i64} {
  func.func @_project_kernel(%arg0: i32, %arg1: memref<128x32xf32, #tpu.memory_space<vmem>>, %arg2: memref<32x128xf32, #tpu.memory_space<vmem>>, %arg3: memref<128x128xf32, #tpu.memory_space<vmem>>) attributes {dimension_semantics = [#tpu.dimension_semantics<parallel>], iteration_bounds = array<i64: 1>, scalar_prefetch = 0 : i64, scratch_operands = 0 : i64, tpu.core_type = #tpu.core_type<tc>, window_params = [{transform_indices = @transform_0, window_bounds = array<i64: 128, 32>}, {pipeline_mode = #tpu.pipeline_mode<synchronous>, transform_indices = @transform_1, window_bounds = array<i64: 32, 128>}, {transform_indices = @transform_2, window_bounds = array<i64: 128, 128>}]} {
    %c0 = arith.constant 0 : index
    %c0_0 = arith.constant 0 : index
    %0 = vector.load %arg1[%c0, %c0_0] : memref<128x32xf32, #tpu.memory_space<vmem>>, vector<128x32xf32>
    %c0_1 = arith.constant 0 : index
    %c0_2 = arith.constant 0 : index
    %1 = vector.load %arg2[%c0_1, %c0_2] : memref<32x128xf32, #tpu.memory_space<vmem>>, vector<32x128xf32>
    %cst = arith.constant dense<0.000000e+00> : vector<128x128xf32>
    %2 = tpu.matmul %0, %1, %cst {dimension_numbers = #tpu.dot_dimension_numbers<[1], [0], [0], [1], [0, 0, 1, 1], [], []>} : vector<128x32xf32>, vector<32x128xf32>, vector<128x128xf32> -> vector<128x128xf32>
    %c0_3 = arith.constant 0 : index
    %c0_4 = arith.constant 0 : index
    %3 = vector.load %arg3[%c0_3, %c0_4] : memref<128x128xf32, #tpu.memory_space<vmem>>, vector<128x128xf32>
    tpu.vector_store %arg3[%c0_3, %c0_4], %2 {strides = array<i32>} : memref<128x128xf32, #tpu.memory_space<vmem>>, vector<128x128xf32>,
    return
  }
  func.func @transform_0(%arg0: i32) -> (i32, i32) {
    %c0_i32 = arith.constant 0 : i32
    %c0_i32_0 = arith.constant 0 : i32
    return %arg0, %c0_i32 : i32, i32
  }
  func.func @transform_1(%arg0: i32) -> (i32, i32) {
    %c0_i32 = arith.constant 0 : i32
    %c0_i32_0 = arith.constant 0 : i32
    %c0_i32_1 = arith.constant 0 : i32
    return %c0_i32, %c0_i32_0 : i32, i32
  }
  func.func @transform_2(%arg0: i32) -> (i32, i32) {
    %c0_i32 = arith.constant 0 : i32
    %c0_i32_0 = arith.constant 0 : i32
    return %arg0, %c0_i32 : i32, i32
  }
}

</mosaic_0001>

<llo_original>
// kernel: tpu_custom_call.1
$region0: #{tpu_custom_call.1}
  #allocation0 [shape = 'u32[]', space=smem, size = 0x4, offset = 0x4, fixed_abs, tag = 'smem constant byte address 0x4 - core index']
  #allocation1 [shape = 'u32[144,128]{1,0:T(1,128)}', space=vmem, size = 0x12000, scoped, tag = 'internal scratch']
  %s0 = inlined_call_operand.vmem [shape: f32[128,32], index: 0, kind: input, shape index: {}]
  %s1 = inlined_call_operand.vmem [shape: f32[32,128], index: 1, kind: input, shape index: {}]
  %s2 = inlined_call_operand.hbm [shape: f32[128,128], index: 2, kind: output, shape index: {}]
  %s3 = sld [smem:[#allocation0]]
  $region18: #{tpu_custom_call.1} parent=0
    _
  %s5 = ssub.s32 1, %s3
  %s6 = scalar_select 0, %s5, %s3
  $region1: #{tpu_custom_call.1} parent=0
    #allocation2 [shape = 'u8[65536]{0}', space=vmem, size = 0x10000, scoped, tag = 'output window, operand 0, single buffered']
    #allocation3 [shape = 's32[1]{0}', space=sflag, size = 0x4, scoped, tag = 'scoped memory for tpu_custom_call.1']
    %7 = vsyncpa [#allocation3], 0
    // Predicated region
    $region2: #{tpu_custom_call.1} parent=1 // pred_check
      _
    $region3: #{tpu_custom_call.1} parent=1 // pred_check_branch
      %9 = sbr.rel (0) target = $region5
    $region4: #{tpu_custom_call.1} parent=1 // pred_region
      _
    $region5: #{tpu_custom_call.1} parent=1 // pred_fallthru
      _
    // Predicated region
    $region6: #{tpu_custom_call.1} parent=1 // pred_check
      _
    $region7: #{tpu_custom_call.1} parent=1 // pred_check_branch
      %11 = sbr.rel (0) target = $region9
    $region8: #{tpu_custom_call.1} parent=1 // pred_region
      _
    $region9: #{tpu_custom_call.1} parent=1 // pred_fallthru
      _
    %v12 = vld [vmem:[%s0] sm:$0xff]
    %v13 = vld [vmem:[%s0 + $0x8] sm:$0xff]
    %v14 = vld [vmem:[%s0 + $0x10] sm:$0xff]
    %v15 = vld [vmem:[%s0 + $0x18] sm:$0xff]
    %v16 = vld [vmem:[%s0 + $0x20] sm:$0xff]
    %v17 = vld [vmem:[%s0 + $0x28] sm:$0xff]
    %v18 = vld [vmem:[%s0 + $0x30] sm:$0xff]
    %v19 = vld [vmem:[%s0 + $0x38] sm:$0xff]
    %v20 = vld [vmem:[%s0 + $0x40] sm:$0xff]
    %v21 = vld [vmem:[%s0 + $0x48] sm:$0xff]
    %v22 = vld [vmem:[%s0 + $0x50] sm:$0xff]
    %v23 = vld [vmem:[%s0 + $0x58] sm:$0xff]
    %v24 = vld [vmem:[%s0 + $0x60] sm:$0xff]
    %v25 = vld [vmem:[%s0 + $0x68] sm:$0xff]
    %v26 = vld [vmem:[%s0 + $0x70] sm:$0xff]
    %v27 = vld [vmem:[%s0 + $0x78] sm:$0xff]
    %v28 = vld [vmem:[%s1] sm:$0xff]
    %v29 = vld [vmem:[%s1 + $0x8] sm:$0xff]
    %v30 = vld [vmem:[%s1 + $0x10] sm:$0xff]
    %v31 = vld [vmem:[%s1 + $0x18] sm:$0xff]
    %vm32 = vcmask 261120
    %v34 = vsel %vm32, %v12, 0
    %v37 = vsel %vm32, %v13, 0
    %v40 = vsel %vm32, %v14, 0
    %v43 = vsel %vm32, %v15, 0
    %v46 = vsel %vm32, %v16, 0
    %v49 = vsel %vm32, %v17, 0
    %v52 = vsel %vm32, %v18, 0
    %v55 = vsel %vm32, %v19, 0
    %v58 = vsel %vm32, %v20, 0
    %v61 = vsel %vm32, %v21, 0
    %v64 = vsel %vm32, %v22, 0
    %v67 = vsel %vm32, %v23, 0
    %v70 = vsel %vm32, %v24, 0
    %v73 = vsel %vm32, %v25, 0
    %v76 = vsel %vm32, %v26, 0
    %v79 = vsel %vm32, %v27, 0
    %81 = vmatprep.subr.mxu0 0.0
    %82 = vmatpush1.msra.mxu0 %v28
    %83 = vmatprep.subr.mxu0 0.0
    %84 = vmatpush1.msra.mxu0 %v29
    %85 = vmatprep.subr.mxu0 0.0
    %86 = vmatpush1.msra.mxu0 %v30
    %87 = vmatprep.subr.mxu0 0.0
    %88 = vmatpush1.msra.mxu0 %v31
    %89 = vmatprep.subr.mxu0 0.0
    %90 = vmatpush1.msra.mxu0 0.0
    %91 = vmatprep.subr.mxu0 0.0
    %92 = vmatpush1.msra.mxu0 0.0
    %93 = vmatprep.subr.mxu0 0.0
    %94 = vmatpush1.msra.mxu0 0.0
    %95 = vmatprep.subr.mxu0 0.0
    %96 = vmatpush1.msra.mxu0 0.0
    %97 = vmatprep.subr.mxu0 0.0
    %98 = vmatpush1.msra.mxu0 0.0
    %99 = vmatprep.subr.mxu0 0.0
    %100 = vmatpush1.msra.mxu0 0.0
    %101 = vmatprep.subr.mxu0 0.0
    %102 = vmatpush1.msra.mxu0 0.0
    %103 = vmatprep.subr.mxu0 0.0
    %104 = vmatpush1.msra.mxu0 0.0
    %105 = vmatprep.subr.mxu0 0.0
    %106 = vmatpush1.msra.mxu0 0.0
    %107 = vmatprep.subr.mxu0 0.0
    %108 = vmatpush1.msra.mxu0 0.0
    %109 = vmatprep.subr.mxu0 0.0
    %110 = vmatpush1.msra.mxu0 0.0
    %111 = vmatprep.subr.mxu0 0.0
    %112 = vmatpush1.msra.mxu0 0.0
    %113 = vmatprep.subr.mxu0 0.0
    %114 = vmatpush1.msra.mxu0 0.0
    %115 = vmatprep.subr.mxu0 0.0
    %116 = vmatpush1.msra.mxu0 0.0
    %117 = vmatprep.subr.mxu0 0.0
    %118 = vmatpush1.msra.mxu0 0.0
    %119 = vmatprep.subr.mxu0 0.0
    %120 = vmatpush1.msra.mxu0 0.0
    %121 = vmatprep.subr.mxu0 0.0
    %122 = vmatpush1.msra.mxu0 0.0
    %123 = vmatprep.subr.mxu0 0.0
    %124 = vmatpush1.msra.mxu0 0.0
    %125 = vmatprep.subr.mxu0 0.0
    %126 = vmatpush1.msra.mxu0 0.0
    %127 = vmatprep.subr.mxu0 0.0
    %128 = vmatpush1.msra.mxu0 0.0
    %129 = vmatprep.subr.mxu0 0.0
    %130 = vmatpush1.msra.mxu0 0.0
    %131 = vmatprep.subr.mxu0 0.0
    %132 = vmatpush1.msra.mxu0 0.0
    %133 = vmatprep.subr.mxu0 0.0
    %134 = vmatpush1.msra.mxu0 0.0
    %135 = vmatprep.subr.mxu0 0.0
    %136 = vmatpush1.msra.mxu0 0.0
    %137 = vmatprep.subr.mxu0 0.0
    %138 = vmatpush1.msra.mxu0 0.0
    %139 = vmatprep.subr.mxu0 0.0
    %140 = vmatpush1.msra.mxu0 0.0
    %141 = vmatprep.subr.mxu0 0.0
    %142 = vmatpush1.msra.mxu0 0.0
    %143 = vmatprep.subr.mxu0 0.0
    %144 = vmatpush1.msra.mxu0 0.0
    %145 = vmatprep.mubr.f32.mxu0 0.0
    %146 = vmatmul.mubr.f32.gmra.mrb[0].mxu0 %v34
    %v147 = vpop.f32.mrb[0].mxu0
    %v148 = vadd.f32 0.0, %v147
    %v149 = vpop.f32.mrb[0].mxu0
    %150 = vmatprep.mubr.f32.mxu0 0.0
    %151 = vmatmul.mubr.f32.gmra.mrb[0].mxu0 %v37
    %v152 = vpop.f32.mrb[0].mxu0
    %v153 = vadd.f32 0.0, %v152
    %v154 = vpop.f32.mrb[0].mxu0
    %155 = vmatprep.mubr.f32.mxu0 0.0
    %156 = vmatmul.mubr.f32.gmra.mrb[0].mxu0 %v40
    %v157 = vpop.f32.mrb[0].mxu0
    %v158 = vadd.f32 0.0, %v157
    %v159 = vpop.f32.mrb[0].mxu0
    %160 = vmatprep.mubr.f32.mxu0 0.0
    %161 = vmatmul.mubr.f32.gmra.mrb[0].mxu0 %v43
    %v162 = vpop.f32.mrb[0].mxu0
    %v163 = vadd.f32 0.0, %v162
    %v164 = vpop.f32.mrb[0].mxu0
    %165 = vmatprep.mubr.f32.mxu0 0.0
    %166 = vmatmul.mubr.f32.gmra.mrb[0].mxu0 %v46
    %v167 = vpop.f32.mrb[0].mxu0
    %v168 = vadd.f32 0.0, %v167
    %v169 = vpop.f32.mrb[0].mxu0
    %170 = vmatprep.mubr.f32.mxu0 0.0
    %171 = vmatmul.mubr.f32.gmra.mrb[0].mxu0 %v49
    %v172 = vpop.f32.mrb[0].mxu0
    %v173 = vadd.f32 0.0, %v172
    %v174 = vpop.f32.mrb[0].mxu0
    %175 = vmatprep.mubr.f32.mxu0 0.0
    %176 = vmatmul.mubr.f32.gmra.mrb[0].mxu0 %v52
    %v177 = vpop.f32.mrb[0].mxu0
    %v178 = vadd.f32 0.0, %v177
    %v179 = vpop.f32.mrb[0].mxu0
    %180 = vmatprep.mubr.f32.mxu0 0.0
    %181 = vmatmul.mubr.f32.gmra.mrb[0].mxu0 %v55
    %v182 = vpop.f32.mrb[0].mxu0
    %v183 = vadd.f32 0.0, %v182
    %v184 = vpop.f32.mrb[0].mxu0
    %185 = vmatprep.mubr.f32.mxu0 0.0
    %186 = vmatmul.mubr.f32.gmra.mrb[0].mxu0 %v58
    %v187 = vpop.f32.mrb[0].mxu0
    %v188 = vadd.f32 0.0, %v187
    %v189 = vpop.f32.mrb[0].mxu0
    %190 = vmatprep.mubr.f32.mxu0 0.0
    %191 = vmatmul.mubr.f32.gmra.mrb[0].mxu0 %v61
    %v192 = vpop.f32.mrb[0].mxu0
    %v193 = vadd.f32 0.0, %v192
    %v194 = vpop.f32.mrb[0].mxu0
    %195 = vmatprep.mubr.f32.mxu0 0.0
    %196 = vmatmul.mubr.f32.gmra.mrb[0].mxu0 %v64
    %v197 = vpop.f32.mrb[0].mxu0
    %v198 = vadd.f32 0.0, %v197
    %v199 = vpop.f32.mrb[0].mxu0
    %200 = vmatprep.mubr.f32.mxu0 0.0
    %201 = vmatmul.mubr.f32.gmra.mrb[0].mxu0 %v67
    %v202 = vpop.f32.mrb[0].mxu0
    %v203 = vadd.f32 0.0, %v202
    %v204 = vpop.f32.mrb[0].mxu0
    %205 = vmatprep.mubr.f32.mxu0 0.0
    %206 = vmatmul.mubr.f32.gmra.mrb[0].mxu0 %v70
    %v207 = vpop.f32.mrb[0].mxu0
    %v208 = vadd.f32 0.0, %v207
    %v209 = vpop.f32.mrb[0].mxu0
    %210 = vmatprep.mubr.f32.mxu0 0.0
    %211 = vmatmul.mubr.f32.gmra.mrb[0].mxu0 %v73
    %v212 = vpop.f32.mrb[0].mxu0
    %v213 = vadd.f32 0.0, %v212
    %v214 = vpop.f32.mrb[0].mxu0
    %215 = vmatprep.mubr.f32.mxu0 0.0
    %216 = vmatmul.mubr.f32.gmra.mrb[0].mxu0 %v76
    %v217 = vpop.f32.mrb[0].mxu0
    %v218 = vadd.f32 0.0, %v217
    %v219 = vpop.f32.mrb[0].mxu0
    %220 = vmatprep.mubr.f32.mxu0 0.0
    %221 = vmatmul.mubr.f32.gmra.mrb[0].mxu0 %v79
    %v222 = vpop.f32.mrb[0].mxu0
    %v223 = vadd.f32 0.0, %v222
    %v224 = vpop.f32.mrb[0].mxu0
    %225 = vdwg.mxu0
    %226 = vst [vmem:[#allocation2] sm:$0xff] %v148
    %227 = vst [vmem:[#allocation2 + $0x8] sm:$0xff] %v153
    %228 = vst [vmem:[#allocation2 + $0x10] sm:$0xff] %v158
    %229 = vst [vmem:[#allocation2 + $0x18] sm:$0xff] %v163
    %230 = vst [vmem:[#allocation2 + $0x20] sm:$0xff] %v168
    %231 = vst [vmem:[#allocation2 + $0x28] sm:$0xff] %v173
    %232 = vst [vmem:[#allocation2 + $0x30] sm:$0xff] %v178
    %233 = vst [vmem:[#allocation2 + $0x38] sm:$0xff] %v183
    %234 = vst [vmem:[#allocation2 + $0x40] sm:$0xff] %v188
    %235 = vst [vmem:[#allocation2 + $0x48] sm:$0xff] %v193
    %236 = vst [vmem:[#allocation2 + $0x50] sm:$0xff] %v198
    %237 = vst [vmem:[#allocation2 + $0x58] sm:$0xff] %v203
    %238 = vst [vmem:[#allocation2 + $0x60] sm:$0xff] %v208
    %239 = vst [vmem:[#allocation2 + $0x68] sm:$0xff] %v213
    %240 = vst [vmem:[#allocation2 + $0x70] sm:$0xff] %v218
    %241 = vst [vmem:[#allocation2 + $0x78] sm:$0xff] %v223
    // Predicated region
    $region10: #{tpu_custom_call.1} parent=1 // pred_check
      _
    $region11: #{tpu_custom_call.1} parent=1 // pred_check_branch
      %243 = sbr.rel (0) target = $region13
    $region12: #{tpu_custom_call.1} parent=1 // pred_region
      %s245 = ssub.s32 2048, 2048
      %246 = vsyncadd [#allocation3], %s245
      %s247 = sshll.u32 [#allocation2], 4
      %s248 = int_to_ptr.vmem [resolvable:$true] %s247
      %253 = dma.vmem_to_hbm [thread:$0]  %s248, 2048, %s2, [#allocation3], 128, 128, 8
    $region13: #{tpu_custom_call.1} parent=1 // pred_fallthru
      _
    // Predicated region
    $region14: #{tpu_custom_call.1} parent=1 // pred_check
      _
    $region15: #{tpu_custom_call.1} parent=1 // pred_check_branch
      %255 = sbr.rel (0) target = $region17
    $region16: #{tpu_custom_call.1} parent=1 // pred_region
      %256 = dma.done [#allocation3], 2048
    $region17: #{tpu_custom_call.1} parent=1 // pred_fallthru
      _
    %257 = vsyncpa [#allocation3], 1

</llo_original>
